<compile_context>
chip_gen: v5e
topology: v5e:2x2
jax: 0.10.0
libtpu: 0.0.40
codegen_flags: <defaults>
</compile_context>

<pallas_src>
import jax
import jax.numpy as jnp
from jax.experimental import pallas as pl
from jax.experimental.pallas import tpu as pltpu

COMPUTE_DTYPE = jnp.bfloat16   # MXU-native on v5e/v6e/v7x; accumulation stays f32
_MAX_TILE_B = 256              # cap default batch tile: fits v7x VMEM, lets large
                               # batches produce >= 2 "parallel" grid steps (2 TCs)


def prep_encoder_params(params):
    """One-time parameter prep (do this at param-load time, NOT per forward call).

    params: PyTorch-shaped dict: w1 (H,D), b1 (H,), w11/w12 (Z,H), b11/b12 (Z,).
    Returns a dict of kernel-ready, padded, bf16/f32 tensors plus dims.
    """
    H, D = params["w1"].shape
    Z = params["w11"].shape[0]

    # Pad hidden dim to a lane-dense multiple of 128; pad fused head to >= 128.
    HP = pl.cdiv(H, 128) * 128
    ZP = max(128, pl.cdiv(2 * Z, 128) * 128)

    # W1^T padded with zero columns; b1 padded with zeros  ->  padded hidden
    # columns are relu(0) == 0, so they contribute nothing downstream.
    w1t = jnp.pad(params["w1"].T, ((0, 0), (0, HP - H))).astype(COMPUTE_DTYPE)
    b1 = jnp.pad(params["b1"], (0, HP - H)).reshape(1, HP).astype(jnp.float32)

    # Fused heads: [W11^T | W12^T] -> (H, 2Z), zero-pad rows to HP and cols to ZP.
    w_head = jnp.concatenate([params["w11"].T, params["w12"].T], axis=1)
    w_head = jnp.pad(w_head, ((0, HP - H), (0, ZP - 2 * Z))).astype(COMPUTE_DTYPE)
    b_head = jnp.concatenate([params["b11"], params["b12"]])
    b_head = jnp.pad(b_head, (0, ZP - 2 * Z)).reshape(1, ZP).astype(jnp.float32)

    return dict(w1t=w1t, b1=b1, w_head=w_head, b_head=b_head,
                input_dim=D, hidden_pad=HP, head_pad=ZP, z_dim=Z)


def encoder_forward(x, prepped, *, tile_b=None):
    """x: [B, input_dim] float32. prepped: output of prep_encoder_params.

    Returns (mean, std), each [B, z_dim] float32.
    """
    B, D = x.shape
    assert D == prepped["input_dim"]
    HP = prepped["hidden_pad"]
    ZP = prepped["head_pad"]
    Z = prepped["z_dim"]

    # Batch tiling: whole batch in ONE grid step when small (per-step pipeline
    # overhead ~0.35us would otherwise dominate); cap at _MAX_TILE_B so large
    # batches stay inside v7x's 64 MiB VMEM and shard across both TensorCores.
    if tile_b is None:
        tile_b = B if B <= _MAX_TILE_B else _MAX_TILE_B
    assert B % tile_b == 0, "batch must be divisible by tile_b"
    if tile_b != B:
        # The in-VMEM bf16 cast of the x tile packs two rows per sublane:
        # require the bf16-safe minimum (16) rather than the f32 minimum (8).
        assert tile_b % 16 == 0, "partial-batch tiles must be a multiple of 16"

    grid = (B // tile_b,)

    def kernel(x_ref, w1t_ref, b1_ref, wh_ref, bh_ref, out_ref):
        # Cast x to bf16 in VMEM (free VPU filler) -- no wrapper-side HBM pass.
        xb = x_ref[...].astype(COMPUTE_DTYPE)
        # --- linear1 + ReLU (bf16 MXU, f32 accumulate), lane-dense (tb, HP) ---
        h = jnp.dot(xb, w1t_ref[...], preferred_element_type=jnp.float32)
        h = jnp.maximum(h + b1_ref[...], 0.0)
        hb = h.astype(COMPUTE_DTYPE)
        # --- fused heads: one MXU push producing a (tb, ZP) slab --------------
        pre = jnp.dot(hb, wh_ref[...], preferred_element_type=jnp.float32)
        pre = pre + bh_ref[...]
        # PyTorch nn.Softplus (beta=1, threshold=20): x for x > 20 else log1p(exp(x))
        sp = jnp.where(pre > 20.0, pre, jnp.log1p(jnp.exp(jnp.minimum(pre, 20.0))))
        # lanes [0, Z): identity (mean); lanes [Z, 2Z): softplus (std);
        # lanes >= 2Z: padding (sliced off in the wrapper).
        lane = jax.lax.broadcasted_iota(jnp.int32, pre.shape, dimension=1)
        out_ref[...] = jnp.where(lane < Z, pre, sp)

    # Replicated (grid-invariant) parameter blocks.
    rep = lambda shape: pl.BlockSpec(shape, lambda i: (0, 0))

    out = pl.pallas_call(
        kernel,
        out_shape=jax.ShapeDtypeStruct((B, ZP), jnp.float32),
        grid_spec=pl.GridSpec(
            grid=grid,
            in_specs=[
                pl.BlockSpec((tile_b, D), lambda i: (i, 0)),   # x tile over batch (f32)
                rep((D, HP)),                                  # W1^T  (bf16, padded)
                rep((1, HP)),                                  # b1    (f32, padded)
                rep((HP, ZP)),                                 # fused head weight (bf16)
                rep((1, ZP)),                                  # fused head bias   (f32)
            ],
            out_specs=pl.BlockSpec((tile_b, ZP), lambda i: (i, 0)),
        ),
        compiler_params=pltpu.CompilerParams(
            dimension_semantics=("parallel",),
            # Explicit scoped-VMEM budget: the grid-invariant weights are still
            # double-buffered by the default pipeline; keep headroom explicit
            # (matters on v7x's 64 MiB as H/D scale).
            vmem_limit_bytes=32 * 1024 * 1024,
        ),
    )(x, prepped["w1t"], prepped["b1"], prepped["w_head"], prepped["b_head"])

    mean = out[:, :Z]
    std = out[:, Z:2 * Z]
    return mean, std


def init_params(key, input_dim, hidden_dim, z_dim):
    """Deterministic init mimicking PyTorch nn.Linear (uniform +/- 1/sqrt(fan_in))."""
    ks = jax.random.split(key, 6)

    def lin(kw, kb, fan_in, fan_out):
        bound = 1.0 / jnp.sqrt(fan_in)
        w = jax.random.uniform(kw, (fan_out, fan_in), jnp.float32, -bound, bound)
        b = jax.random.uniform(kb, (fan_out,), jnp.float32, -bound, bound)
        return w, b

    w1, b1 = lin(ks[0], ks[1], input_dim, hidden_dim)
    w11, b11 = lin(ks[2], ks[3], hidden_dim, z_dim)
    w12, b12 = lin(ks[4], ks[5], hidden_dim, z_dim)
    return dict(w1=w1, b1=b1, w11=w11, b11=b11, w12=w12, b12=b12)


def encoder_reference(x, p):
    """Plain-JAX reference matching the PyTorch forward, with the same bf16
    matmul-input casts the kernel uses (f32 accumulation)."""
    xd = x.astype(COMPUTE_DTYPE)
    h = jnp.maximum(
        jnp.dot(xd, p["w1"].T.astype(COMPUTE_DTYPE),
                preferred_element_type=jnp.float32) + p["b1"], 0.0)
    hd = h.astype(COMPUTE_DTYPE)
    mean = jnp.dot(hd, p["w11"].T.astype(COMPUTE_DTYPE),
                   preferred_element_type=jnp.float32) + p["b11"]
    std = jax.nn.softplus(
        jnp.dot(hd, p["w12"].T.astype(COMPUTE_DTYPE),
                preferred_element_type=jnp.float32) + p["b12"])
    return mean, std


if __name__ == "__main__":
    # Small, TPU-friendly shapes consistent with the module's forward.
    B, INPUT_DIM, HIDDEN_DIM, Z_DIM = 16, 128, 64, 32

    key = jax.random.PRNGKey(0)
    kx, kp = jax.random.split(key)
    x = jax.random.normal(kx, (B, INPUT_DIM), jnp.float32)
    params = init_params(kp, INPUT_DIM, HIDDEN_DIM, Z_DIM)

    # One-time parameter prep (transpose / fuse / pad / cast), outside the hot path.
    prepped = prep_encoder_params(params)

    mean, std = encoder_forward(x, prepped)
    mean = jax.block_until_ready(mean)
    std = jax.block_until_ready(std)

    mean_ref, std_ref = encoder_reference(x, params)
    assert mean.shape == (B, Z_DIM) and std.shape == (B, Z_DIM)
    assert jnp.allclose(mean, mean_ref, atol=1e-3, rtol=1e-3)
    assert jnp.allclose(std, std_ref, atol=1e-3, rtol=1e-3)
    assert bool(jnp.all(std > 0.0))  # softplus constraint: std strictly positive

    print("KERNEL_OK")
</pallas_src>

<mosaic_0001>
module attributes {stable_mosaic.version = 11 : i64} {
  func.func @kernel(%arg0: i32, %arg1: memref<16x128xf32, #tpu.memory_space<vmem>>, %arg2: memref<128x128xbf16, #tpu.memory_space<vmem>>, %arg3: memref<1x128xf32, #tpu.memory_space<vmem>>, %arg4: memref<128x128xbf16, #tpu.memory_space<vmem>>, %arg5: memref<1x128xf32, #tpu.memory_space<vmem>>, %arg6: memref<16x128xf32, #tpu.memory_space<vmem>>) attributes {dimension_semantics = [#tpu.dimension_semantics<parallel>], iteration_bounds = array<i64: 1>, scalar_prefetch = 0 : i64, scratch_operands = 0 : i64, tpu.core_type = #tpu.core_type<tc>, window_params = [{transform_indices = @transform_0, window_bounds = array<i64: 16, 128>}, {pipeline_mode = #tpu.pipeline_mode<synchronous>, transform_indices = @transform_1, window_bounds = array<i64: 128, 128>}, {pipeline_mode = #tpu.pipeline_mode<synchronous>, transform_indices = @transform_2, window_bounds = array<i64: 1, 128>}, {pipeline_mode = #tpu.pipeline_mode<synchronous>, transform_indices = @transform_3, window_bounds = array<i64: 128, 128>}, {pipeline_mode = #tpu.pipeline_mode<synchronous>, transform_indices = @transform_4, window_bounds = array<i64: 1, 128>}, {transform_indices = @transform_5, window_bounds = array<i64: 16, 128>}]} {
    %c0 = arith.constant 0 : index
    %c0_0 = arith.constant 0 : index
    %0 = vector.load %arg1[%c0, %c0_0] : memref<16x128xf32, #tpu.memory_space<vmem>>, vector<16x128xf32>
    %1 = arith.truncf %0 : vector<16x128xf32> to vector<16x128xbf16>
    %c0_1 = arith.constant 0 : index
    %c0_2 = arith.constant 0 : index
    %2 = vector.load %arg2[%c0_1, %c0_2] : memref<128x128xbf16, #tpu.memory_space<vmem>>, vector<128x128xbf16>
    %cst = arith.constant dense<0.000000e+00> : vector<16x128xf32>
    %3 = tpu.matmul %1, %2, %cst {dimension_numbers = #tpu.dot_dimension_numbers<[1], [0], [0], [1], [0, 0, 1, 1], [], []>} : vector<16x128xbf16>, vector<128x128xbf16>, vector<16x128xf32> -> vector<16x128xf32>
    %c0_3 = arith.constant 0 : index
    %c0_4 = arith.constant 0 : index
    %4 = vector.load %arg3[%c0_3, %c0_4] : memref<1x128xf32, #tpu.memory_space<vmem>>, vector<1x128xf32>
    %5 = vector.broadcast %4 : vector<1x128xf32> to vector<16x128xf32>
    %6 = arith.addf %3, %5 : vector<16x128xf32>
    %cst_5 = arith.constant 0.000000e+00 : f32
    %7 = vector.broadcast %cst_5 : f32 to vector<16x128xf32>
    %8 = arith.maximumf %6, %7 : vector<16x128xf32>
    %9 = arith.truncf %8 : vector<16x128xf32> to vector<16x128xbf16>
    %c0_6 = arith.constant 0 : index
    %c0_7 = arith.constant 0 : index
    %10 = vector.load %arg4[%c0_6, %c0_7] : memref<128x128xbf16, #tpu.memory_space<vmem>>, vector<128x128xbf16>
    %cst_8 = arith.constant dense<0.000000e+00> : vector<16x128xf32>
    %11 = tpu.matmul %9, %10, %cst_8 {dimension_numbers = #tpu.dot_dimension_numbers<[1], [0], [0], [1], [0, 0, 1, 1], [], []>} : vector<16x128xbf16>, vector<128x128xbf16>, vector<16x128xf32> -> vector<16x128xf32>
    %c0_9 = arith.constant 0 : index
    %c0_10 = arith.constant 0 : index
    %12 = vector.load %arg5[%c0_9, %c0_10] : memref<1x128xf32, #tpu.memory_space<vmem>>, vector<1x128xf32>
    %13 = vector.broadcast %12 : vector<1x128xf32> to vector<16x128xf32>
    %14 = arith.addf %11, %13 : vector<16x128xf32>
    %cst_11 = arith.constant 2.000000e+01 : f32
    %15 = vector.broadcast %cst_11 : f32 to vector<16x128xf32>
    %16 = arith.cmpf ogt, %14, %15 : vector<16x128xf32>
    %cst_12 = arith.constant 2.000000e+01 : f32
    %17 = vector.broadcast %cst_12 : f32 to vector<16x128xf32>
    %18 = arith.minimumf %14, %17 : vector<16x128xf32>
    %19 = math.exp %18 : vector<16x128xf32>
    %20 = math.log1p %19 : vector<16x128xf32>
    %21 = arith.select %16, %14, %20 : vector<16x128xi1>, vector<16x128xf32>
    %22 = tpu.iota {dimensions = array<i32: 1>} : vector<16x128xi32>
    %c32_i32 = arith.constant 32 : i32
    %23 = vector.broadcast %c32_i32 : i32 to vector<16x128xi32>
    %24 = arith.cmpi slt, %22, %23 : vector<16x128xi32>
    %25 = arith.select %24, %14, %21 : vector<16x128xi1>, vector<16x128xf32>
    %c0_13 = arith.constant 0 : index
    %c0_14 = arith.constant 0 : index
    %26 = vector.load %arg6[%c0_13, %c0_14] : memref<16x128xf32, #tpu.memory_space<vmem>>, vector<16x128xf32>
    tpu.vector_store %arg6[%c0_13, %c0_14], %25 {strides = array<i32>} : memref<16x128xf32, #tpu.memory_space<vmem>>, vector<16x128xf32>,
    return
  }
  func.func @transform_0(%arg0: i32) -> (i32, i32) {
    %c0_i32 = arith.constant 0 : i32
    %c0_i32_0 = arith.constant 0 : i32
    return %arg0, %c0_i32 : i32, i32
  }
  func.func @transform_1(%arg0: i32) -> (i32, i32) {
    %c0_i32 = arith.constant 0 : i32
    %c0_i32_0 = arith.constant 0 : i32
    %c0_i32_1 = arith.constant 0 : i32
    return %c0_i32, %c0_i32_0 : i32, i32
  }
  func.func @transform_2(%arg0: i32) -> (i32, i32) {
    %c0_i32 = arith.constant 0 : i32
    %c0_i32_0 = arith.constant 0 : i32
    %c0_i32_1 = arith.constant 0 : i32
    return %c0_i32, %c0_i32_0 : i32, i32
  }
  func.func @transform_3(%arg0: i32) -> (i32, i32) {
    %c0_i32 = arith.constant 0 : i32
    %c0_i32_0 = arith.constant 0 : i32
    %c0_i32_1 = arith.constant 0 : i32
    return %c0_i32, %c0_i32_0 : i32, i32
  }
  func.func @transform_4(%arg0: i32) -> (i32, i32) {
    %c0_i32 = arith.constant 0 : i32
    %c0_i32_0 = arith.constant 0 : i32
    %c0_i32_1 = arith.constant 0 : i32
    return %c0_i32, %c0_i32_0 : i32, i32
  }
  func.func @transform_5(%arg0: i32) -> (i32, i32) {
    %c0_i32 = arith.constant 0 : i32
    %c0_i32_0 = arith.constant 0 : i32
    return %arg0, %c0_i32 : i32, i32
  }
}

</mosaic_0001>

<llo_original>
// kernel: tpu_custom_call.1
$region0: #{tpu_custom_call.1}
  #allocation0 [shape = 'u32[]', space=smem, size = 0x4, offset = 0x4, fixed_abs, tag = 'smem constant byte address 0x4 - core index']
  #allocation1 [shape = 'u32[72,128]{1,0:T(1,128)}', space=vmem, size = 0x9000, scoped, tag = 'internal scratch']
  %s0 = inlined_call_operand.hbm [shape: f32[16,128], index: 0, kind: input, shape index: {}]
  %s1 = inlined_call_operand.hbm [shape: bf16[128,128], index: 1, kind: input, shape index: {}]
  %s2 = inlined_call_operand.vmem [shape: f32[1,128], index: 2, kind: input, shape index: {}]
  %s3 = inlined_call_operand.hbm [shape: bf16[128,128], index: 3, kind: input, shape index: {}]
  %s4 = inlined_call_operand.vmem [shape: f32[1,128], index: 4, kind: input, shape index: {}]
  %s5 = inlined_call_operand.hbm [shape: f32[16,128], index: 5, kind: output, shape index: {}]
  %s6 = sld [smem:[#allocation0]]
  $region42: #{tpu_custom_call.1} parent=0
    _
  %s8 = ssub.s32 1, %s6
  %s9 = scalar_select 0, %s8, %s6
  $region1: #{tpu_custom_call.1} parent=0
    #allocation2 [shape = 'u8[8192]{0}', space=vmem, size = 0x2000, scoped, tag = 'input window, operand 0, single buffered']
    #allocation3 [shape = 's32[1]{0}', space=sflag, size = 0x4, scoped, tag = 'scoped memory for tpu_custom_call.1']
    #allocation4 [shape = 's32[1]{0}', space=sflag, size = 0x4, scoped, tag = 'scoped memory for tpu_custom_call.1']
    #allocation5 [shape = 'u8[32768]{0}', space=vmem, size = 0x8000, scoped, tag = 'input window, operand 1, single buffered']
    #allocation6 [shape = 's32[1]{0}', space=sflag, size = 0x4, scoped, tag = 'scoped memory for tpu_custom_call.1']
    #allocation7 [shape = 'u8[32768]{0}', space=vmem, size = 0x8000, scoped, tag = 'input window, operand 3, single buffered']
    #allocation8 [shape = 'u8[8192]{0}', space=vmem, size = 0x2000, scoped, tag = 'output window, operand 0, single buffered']
    %10 = vsyncpa [#allocation3], 0
    %11 = vsyncpa [#allocation6], 0
    %12 = vsyncpa [#allocation4], 0
    // Predicated region
    $region2: #{tpu_custom_call.1} parent=1 // pred_check
      _
    $region3: #{tpu_custom_call.1} parent=1 // pred_check_branch
      %14 = sbr.rel (0) target = $region5
    $region4: #{tpu_custom_call.1} parent=1 // pred_region
      %16 = vsyncadd [#allocation3], 0
      %s17 = sshll.u32 %s0, 4
      %s18 = int_to_ptr.hbm [resolvable:$true] %s17
      %s19 = sshll.u32 [#allocation2], 4
      %s20 = int_to_ptr.vmem [resolvable:$true] %s19
      %25 = dma.hbm_to_vmem [thread:$0]  %s18, 256, %s20, [#allocation3], 128, 128, 8
    $region5: #{tpu_custom_call.1} parent=1 // pred_fallthru
      _
    // Predicated region
    $region6: #{tpu_custom_call.1} parent=1 // pred_check
      _
    $region7: #{tpu_custom_call.1} parent=1 // pred_check_branch
      %27 = sbr.rel (0) target = $region9
    $region8: #{tpu_custom_call.1} parent=1 // pred_region
      %29 = vsyncadd [#allocation6], 0
      %s30 = sshll.u32 %s1, 4
      %s31 = int_to_ptr.hbm [resolvable:$true] %s30
      %s32 = sshll.u32 [#allocation5], 4
      %s33 = int_to_ptr.vmem [resolvable:$true] %s32
      %38 = dma.hbm_to_vmem [thread:$0]  %s31, 1024, %s33, [#allocation6], 64, 64, 4
    $region9: #{tpu_custom_call.1} parent=1 // pred_fallthru
      _
    // Predicated region
    $region10: #{tpu_custom_call.1} parent=1 // pred_check
      _
    $region11: #{tpu_custom_call.1} parent=1 // pred_check_branch
      %40 = sbr.rel (0) target = $region13
    $region12: #{tpu_custom_call.1} parent=1 // pred_region
      _
    $region13: #{tpu_custom_call.1} parent=1 // pred_fallthru
      _
    // Predicated region
    $region14: #{tpu_custom_call.1} parent=1 // pred_check
      _
    $region15: #{tpu_custom_call.1} parent=1 // pred_check_branch
      %42 = sbr.rel (0) target = $region17
    $region16: #{tpu_custom_call.1} parent=1 // pred_region
      %44 = vsyncadd [#allocation6], 0
      %s45 = sshll.u32 %s3, 4
      %s46 = int_to_ptr.hbm [resolvable:$true] %s45
      %s47 = sshll.u32 [#allocation7], 4
      %s48 = int_to_ptr.vmem [resolvable:$true] %s47
      %53 = dma.hbm_to_vmem [thread:$0]  %s46, 1024, %s48, [#allocation6], 64, 64, 4
    $region17: #{tpu_custom_call.1} parent=1 // pred_fallthru
      _
    // Predicated region
    $region18: #{tpu_custom_call.1} parent=1 // pred_check
      _
    $region19: #{tpu_custom_call.1} parent=1 // pred_check_branch
      %55 = sbr.rel (0) target = $region21
    $region20: #{tpu_custom_call.1} parent=1 // pred_region
      _
    $region21: #{tpu_custom_call.1} parent=1 // pred_fallthru
      _
    // Predicated region
    $region22: #{tpu_custom_call.1} parent=1 // pred_check
      _
    $region23: #{tpu_custom_call.1} parent=1 // pred_check_branch
      %57 = sbr.rel (0) target = $region25
    $region24: #{tpu_custom_call.1} parent=1 // pred_region
      %59 = dma.done [#allocation3], 256
    $region25: #{tpu_custom_call.1} parent=1 // pred_fallthru
      _
    // Predicated region
    $region26: #{tpu_custom_call.1} parent=1 // pred_check
      _
    $region27: #{tpu_custom_call.1} parent=1 // pred_check_branch
      %61 = sbr.rel (0) target = $region29
    $region28: #{tpu_custom_call.1} parent=1 // pred_region
      %63 = dma.done [#allocation6], 1024
    $region29: #{tpu_custom_call.1} parent=1 // pred_fallthru
      _
    // Predicated region
    $region30: #{tpu_custom_call.1} parent=1 // pred_check
      _
    $region31: #{tpu_custom_call.1} parent=1 // pred_check_branch
      %65 = sbr.rel (0) target = $region33
    $region32: #{tpu_custom_call.1} parent=1 // pred_region
      %67 = dma.done [#allocation6], 1024
    $region33: #{tpu_custom_call.1} parent=1 // pred_fallthru
      _
    %v68 = vld [vmem:[#allocation2] sm:$0xff]
    %v69 = vld [vmem:[#allocation2 + $0x8] sm:$0xff]
    %v70 = vpack.c.bf16 %v69, %v68
    %v71 = vld [vmem:[#allocation5] sm:$0xf]
    %v72 = vld [vmem:[#allocation5 + $0x4] sm:$0xf]
    %v73 = vld [vmem:[#allocation5 + $0x8] sm:$0xf]
    %v74 = vld [vmem:[#allocation5 + $0xc] sm:$0xf]
    %v75 = vld [vmem:[#allocation5 + $0x10] sm:$0xf]
    %v76 = vld [vmem:[#allocation5 + $0x14] sm:$0xf]
    %v77 = vld [vmem:[#allocation5 + $0x18] sm:$0xf]
    %v78 = vld [vmem:[#allocation5 + $0x1c] sm:$0xf]
    %v79 = vld [vmem:[#allocation5 + $0x20] sm:$0xf]
    %v80 = vld [vmem:[#allocation5 + $0x24] sm:$0xf]
    %v81 = vld [vmem:[#allocation5 + $0x28] sm:$0xf]
    %v82 = vld [vmem:[#allocation5 + $0x2c] sm:$0xf]
    %v83 = vld [vmem:[#allocation5 + $0x30] sm:$0xf]
    %v84 = vld [vmem:[#allocation5 + $0x34] sm:$0xf]
    %v85 = vld [vmem:[#allocation5 + $0x38] sm:$0xf]
    %v86 = vld [vmem:[#allocation5 + $0x3c] sm:$0xf]
    %v87 = vld [vmem:[%s2] sm:$0x1]
    %v89 = vperm.slane %v87, 0
    %v107 = vunpack.c.l.b16 %v71
    %v108 = vunpack.c.l.b16 %v72
    %v109 = vunpack.c.l.b16 %v73
    %v110 = vunpack.c.l.b16 %v74
    %v111 = vunpack.c.l.b16 %v75
    %v112 = vunpack.c.l.b16 %v76
    %v113 = vunpack.c.l.b16 %v77
    %v114 = vunpack.c.l.b16 %v78
    %v115 = vunpack.c.l.b16 %v79
    %v116 = vunpack.c.l.b16 %v80
    %v117 = vunpack.c.l.b16 %v81
    %v118 = vunpack.c.l.b16 %v82
    %v119 = vunpack.c.l.b16 %v83
    %v120 = vunpack.c.l.b16 %v84
    %v121 = vunpack.c.l.b16 %v85
    %v122 = vunpack.c.l.b16 %v86
    %v123 = vpack.c.b16 %v108, %v107
    %v124 = vpack.c.b16 %v110, %v109
    %v125 = vpack.c.b16 %v112, %v111
    %v126 = vpack.c.b16 %v114, %v113
    %v127 = vpack.c.b16 %v116, %v115
    %v128 = vpack.c.b16 %v118, %v117
    %v129 = vpack.c.b16 %v120, %v119
    %v130 = vpack.c.b16 %v122, %v121
    %139 = vmatpush.bf16.msra.mxu0 %v130
    %140 = vmatpush.bf16.msra.mxu0 %v129
    %141 = vmatpush.bf16.msra.mxu0 %v128
    %142 = vmatpush.bf16.msra.mxu0 %v127
    %143 = vmatpush.bf16.msra.mxu0 %v126
    %144 = vmatpush.bf16.msra.mxu0 %v125
    %145 = vmatpush.bf16.msra.mxu0 %v124
    %146 = vmatpush.bf16.msra.mxu0 %v123
    %147 = vmatmul.bf16.gmra.mxu0 %v70
    %v148 = vpop.f32.mrf.mxu0
    %v149 = vadd.f32 %v89, %v148
    %v150 = vpop.f32.mrf.mxu0
    %v151 = vadd.f32 %v89, %v150
    %152 = vdwg.mxu0
    %v153 = vmax.f32 %v149, 0.0
    %v154 = vmax.f32 %v151, 0.0
    %v155 = vpack.c.bf16 %v154, %v153
    %v156 = vld [vmem:[#allocation7] sm:$0xf]
    %v157 = vld [vmem:[#allocation7 + $0x4] sm:$0xf]
    %v158 = vld [vmem:[#allocation7 + $0x8] sm:$0xf]
    %v159 = vld [vmem:[#allocation7 + $0xc] sm:$0xf]
    %v160 = vld [vmem:[#allocation7 + $0x10] sm:$0xf]
    %v161 = vld [vmem:[#allocation7 + $0x14] sm:$0xf]
    %v162 = vld [vmem:[#allocation7 + $0x18] sm:$0xf]
    %v163 = vld [vmem:[#allocation7 + $0x1c] sm:$0xf]
    %v164 = vld [vmem:[#allocation7 + $0x20] sm:$0xf]
    %v165 = vld [vmem:[#allocation7 + $0x24] sm:$0xf]
    %v166 = vld [vmem:[#allocation7 + $0x28] sm:$0xf]
    %v167 = vld [vmem:[#allocation7 + $0x2c] sm:$0xf]
    %v168 = vld [vmem:[#allocation7 + $0x30] sm:$0xf]
    %v169 = vld [vmem:[#allocation7 + $0x34] sm:$0xf]
    %v170 = vld [vmem:[#allocation7 + $0x38] sm:$0xf]
    %v171 = vld [vmem:[#allocation7 + $0x3c] sm:$0xf]
    %v172 = vld [vmem:[%s4] sm:$0x1]
    %v174 = vperm.slane %v172, 0
    %v192 = vunpack.c.l.b16 %v156
    %v193 = vunpack.c.l.b16 %v157
    %v194 = vunpack.c.l.b16 %v158
    %v195 = vunpack.c.l.b16 %v159
    %v196 = vunpack.c.l.b16 %v160
    %v197 = vunpack.c.l.b16 %v161
    %v198 = vunpack.c.l.b16 %v162
    %v199 = vunpack.c.l.b16 %v163
    %v200 = vunpack.c.l.b16 %v164
    %v201 = vunpack.c.l.b16 %v165
    %v202 = vunpack.c.l.b16 %v166
    %v203 = vunpack.c.l.b16 %v167
    %v204 = vunpack.c.l.b16 %v168
    %v205 = vunpack.c.l.b16 %v169
    %v206 = vunpack.c.l.b16 %v170
    %v207 = vunpack.c.l.b16 %v171
    %v208 = vpack.c.b16 %v193, %v192
    %v209 = vpack.c.b16 %v195, %v194
    %v210 = vpack.c.b16 %v197, %v196
    %v211 = vpack.c.b16 %v199, %v198
    %v212 = vpack.c.b16 %v201, %v200
    %v213 = vpack.c.b16 %v203, %v202
    %v214 = vpack.c.b16 %v205, %v204
    %v215 = vpack.c.b16 %v207, %v206
    %224 = vmatpush.bf16.msra.mxu0 %v215
    %225 = vmatpush.bf16.msra.mxu0 %v214
    %226 = vmatpush.bf16.msra.mxu0 %v213
    %227 = vmatpush.bf16.msra.mxu0 %v212
    %228 = vmatpush.bf16.msra.mxu0 %v211
    %229 = vmatpush.bf16.msra.mxu0 %v210
    %230 = vmatpush.bf16.msra.mxu0 %v209
    %231 = vmatpush.bf16.msra.mxu0 %v208
    %232 = vmatmul.bf16.gmra.mxu0 %v155
    %v233 = vpop.f32.mrf.mxu0
    %v234 = vadd.f32 %v174, %v233
    %v235 = vpop.f32.mrf.mxu0
    %v236 = vadd.f32 %v174, %v235
    %237 = vdwg.mxu0
    %vm238 = vcmp.gt.f32.partialorder %v234, 20.0
    %vm239 = vcmp.gt.f32.partialorder %v236, 20.0
    %v240 = vmin.f32 %v234, 20.0
    %v241 = vmin.f32 %v236, 20.0
    %v242 = vmul.f32 %v240, 1.442695
    %v243 = vpow.pop %v242
    %v244 = vmul.f32 %v241, 1.442695
    %v245 = vpow.pop %v244
    %v246 = vadd.f32 %v243, 1.0
    %v247 = vlog2.pop %v246
    %v248 = vmul.f32 %v247, 0.6931472
    %v249 = vmul.f32 -0.5, %v243
    %v250 = vadd.f32 %v249, 1.0
    %v251 = vmul.f32 %v250, %v243
    %v252 = vand.u32 2147483647, %v243
    %vm253 = vcmp.lt.f32.partialorder %v252, 0.0004427343
    %v254 = vsel %vm253, %v251, %v248
    %v255 = vadd.f32 %v245, 1.0
    %v256 = vlog2.pop %v255
    %v257 = vmul.f32 %v256, 0.6931472
    %v258 = vmul.f32 -0.5, %v245
    %v259 = vadd.f32 %v258, 1.0
    %v260 = vmul.f32 %v259, %v245
    %v261 = vand.u32 2147483647, %v245
    %vm262 = vcmp.lt.f32.partialorder %v261, 0.0004427343
    %v263 = vsel %vm262, %v260, %v257
    %v264 = vsel %vm238, %v234, %v254
    %v265 = vsel %vm239, %v236, %v263
    %v266 = vlaneseq
    %v267 = vand.u32 %v266, 127
    %vm268 = vcmp.lt.s32.totalorder %v267, 32
    %v269 = vsel %vm268, %v234, %v264
    %v270 = vsel %vm268, %v236, %v265
    %271 = vst [vmem:[#allocation8] sm:$0xff] %v269
    %272 = vst [vmem:[#allocation8 + $0x8] sm:$0xff] %v270
    // Predicated region
    $region34: #{tpu_custom_call.1} parent=1 // pred_check
      _
    $region35: #{tpu_custom_call.1} parent=1 // pred_check_branch
      %274 = sbr.rel (0) target = $region37
    $region36: #{tpu_custom_call.1} parent=1 // pred_region
      %276 = vsyncadd [#allocation4], 0
      %s277 = sshll.u32 [#allocation8], 4
      %s278 = int_to_ptr.vmem [resolvable:$true] %s277
      %s279 = sshll.u32 %s5, 4
      %s280 = int_to_ptr.hbm [resolvable:$true] %s279
      %285 = dma.vmem_to_hbm [thread:$0]  %s278, 256, %s280, [#allocation4], 128, 128, 8
    $region37: #{tpu_custom_call.1} parent=1 // pred_fallthru
      _
    // Predicated region
    $region38: #{tpu_custom_call.1} parent=1 // pred_check
      _
    $region39: #{tpu_custom_call.1} parent=1 // pred_check_branch
      %287 = sbr.rel (0) target = $region41
    $region40: #{tpu_custom_call.1} parent=1 // pred_region
      %289 = dma.done [#allocation4], 256
    $region41: #{tpu_custom_call.1} parent=1 // pred_fallthru
      _
    %290 = vsyncpa [#allocation3], 1
    %291 = vsyncpa [#allocation6], 1
    %292 = vsyncpa [#allocation4], 1

</llo_original>
